<compile_context>
chip_gen: v7x
topology: tpu7x:2x2x1
jax: 0.10.0
libtpu: 0.0.40
codegen_flags: <defaults>
</compile_context>

<pallas_src>
import math

import jax
import jax.numpy as jnp
from jax.experimental import pallas as pl
from jax.experimental.pallas import tpu as pltpu

LANE_PTS = 128              # points packed per lane-row
ROW_LANES = 3 * LANE_PTS    # 384 lanes per row (multiple of 128 -> lane dense)

# ---- static wrap-safety proofs for the rolled gathers in the kernel --------
# channel of lane l is l % 3; wrapped lanes of each roll must fall on the
# UNSELECTED branch of the corresponding jnp.where.
assert ROW_LANES % 128 == 0 and ROW_LANES % 3 == 0
assert 0 % 3 != 2 and 1 % 3 != 2                              # roll(+2) wraps {0,1}: mask2 False there
assert (ROW_LANES - 1) % 3 == 2                               # roll(-1) wraps {383}: mask2 True there
assert (ROW_LANES - 2) % 3 != 0 and (ROW_LANES - 1) % 3 != 0  # roll(-2) wraps {382,383}: mask0 False there
assert 0 % 3 == 0                                             # roll(+1) wraps {0}: mask0 True there


def point_transform_kernel(x_ref, p_ref, o_ref):
    # x_ref: (R, 384) tile, 128 interleaved xyz points per row.
    # p_ref: (8, 384) packed params:
    #   row 0 -> c_0   (coef for d=0)
    #   row 1 -> c_a   (merged coef for d=-2 on c==2 lanes, d=+1 on c in {0,1})
    #   row 2 -> c_b   (merged coef for d=+2 on c==0 lanes, d=-1 on c in {1,2})
    #   row 3 -> bias  (fused bias, lane-periodic)
    #   row 4 -> mask2 (1.0 where channel == 2)
    #   row 5 -> mask0 (1.0 where channel == 0)
    #   rows 6,7 -> zero padding (sublane alignment)
    x = x_ref[...].astype(jnp.float32)

    # Read each param row exactly once (each is used exactly once below, so no
    # repeated broadcast_in_dim is emitted).
    c_0 = p_ref[0:1, :]
    c_a = p_ref[1:2, :]
    c_b = p_ref[2:3, :]
    bias = p_ref[3:4, :]
    m2 = p_ref[4:5, :] > 0.5
    m0 = p_ref[5:6, :] > 0.5

    # Source gathers via XLU lane rotates; out[l] needs in[l + d] and
    # in[l + d] = roll(in, -d)[l].  Wrapped lanes are always on the
    # unselected side of each where (see static asserts above).
    t_a = jnp.where(m2, pltpu.roll(x, shift=2, axis=1),
                        pltpu.roll(x, shift=ROW_LANES - 1, axis=1))
    t_b = jnp.where(m0, pltpu.roll(x, shift=ROW_LANES - 2, axis=1),
                        pltpu.roll(x, shift=1, axis=1))

    acc = x * c_0 + bias
    acc = acc + t_a * c_a
    acc = acc + t_b * c_b
    o_ref[...] = acc.astype(o_ref.dtype)


def _fuse_affine(w1, b1, w2, b2):
    """Fuse the two linears: y = x @ wf.T + bf."""
    w1 = jnp.asarray(w1, jnp.float32)
    b1 = jnp.asarray(b1, jnp.float32)
    w2 = jnp.asarray(w2, jnp.float32)
    b2 = jnp.asarray(b2, jnp.float32)
    wf = w2 @ w1                  # (3, 3)
    bf = w2 @ b1 + b2             # (3,)
    return wf, bf


def _pack_params(wf, bf):
    """Build the (8, 384) lane-periodic coefficient / mask slab."""
    c = jnp.arange(ROW_LANES, dtype=jnp.int32) % 3   # output channel per lane

    def coef(d):
        k = c + d                                    # source channel per lane
        valid = (k >= 0) & (k < 3)
        return jnp.where(valid, wf[c, jnp.clip(k, 0, 2)], jnp.float32(0))

    c_0 = coef(0)
    c_a = coef(-2) + coef(1)      # disjoint supports: c==2 vs c in {0,1}
    c_b = coef(2) + coef(-1)      # disjoint supports: c==0 vs c in {1,2}
    bias = bf[c]
    mask2 = (c == 2).astype(jnp.float32)
    mask0 = (c == 0).astype(jnp.float32)
    zeros = jnp.zeros((ROW_LANES,), jnp.float32)
    return jnp.stack([c_0, c_a, c_b, bias, mask2, mask0, zeros, zeros])


def _pick_block_rows(nrows, dtype, override=None):
    """Adaptive row-block size: >=16 steps on big inputs, VMEM-safe everywhere."""
    align = 16 if jnp.dtype(dtype).itemsize < 4 else 8   # bf16 min sublane tile is (16,128)
    if override is not None:
        r = int(override)
    else:
        target_steps = 16          # >=8 steps per TensorCore even with v7x megacore split
        r = max(64, min(-(-nrows // target_steps), 2048))
        # r<=2048 rows -> <=3 MiB/block, <=12 MiB double-buffered (v5e 16 MiB scoped VMEM ok)
    if r >= nrows:
        return nrows               # single full-extent block (always a legal tile shape)
    return min(max(align, (r // align) * align), nrows)


def _run_lane_dense(xl, params, dtype, block_rows):
    nrows = xl.shape[0]
    r = _pick_block_rows(nrows, dtype, block_rows)
    grid = (pl.cdiv(nrows, r),)    # ragged last block handled by Pallas masking
    return pl.pallas_call(
        point_transform_kernel,
        out_shape=jax.ShapeDtypeStruct((nrows, ROW_LANES), dtype),
        grid_spec=pltpu.PrefetchScalarGridSpec(
            num_scalar_prefetch=0,
            grid=grid,
            in_specs=[
                pl.BlockSpec((r, ROW_LANES), lambda i: (i, 0)),
                pl.BlockSpec((8, ROW_LANES), lambda i: (0, 0)),  # constant -> no re-DMA
            ],
            out_specs=pl.BlockSpec((r, ROW_LANES), lambda i: (i, 0)),
        ),
        compiler_params=pltpu.CompilerParams(
            dimension_semantics=("parallel",)),
    )(xl, params)


def point_transform(x, w1, b1, w2, b2, *, block_rows=None):
    """Applies PointTransform.forward to x of shape (..., 3)."""
    orig_shape = x.shape
    assert orig_shape[-1] == 3, "last dim must be 3 (xyz)"
    m = math.prod(orig_shape[:-1]) if len(orig_shape) > 1 else 1
    xf = x.reshape(m, 3)

    wf, bf = _fuse_affine(w1, b1, w2, b2)

    m_main = (m // LANE_PTS) * LANE_PTS
    tail = m - m_main

    pieces = []
    if m_main:
        x_main = xf if tail == 0 else xf[:m_main]
        nrows = m_main // LANE_PTS
        xl = x_main.reshape(nrows, ROW_LANES)        # free, row-major reshape
        params = _pack_params(wf, bf)
        y_main = _run_lane_dense(xl, params, x.dtype, block_rows)
        pieces.append(y_main.reshape(m_main, 3))
    if tail:
        # <=127 points: cheaper as plain XLA on just the tail than any
        # whole-array pad / slice pass.
        x_t = xf[m_main:].astype(jnp.float32)
        pieces.append((x_t @ wf.T + bf).astype(x.dtype))

    y = pieces[0] if len(pieces) == 1 else jnp.concatenate(pieces, axis=0)
    return y.reshape(orig_shape)


if __name__ == "__main__":
    key = jax.random.PRNGKey(0)
    k1, k2, k3, k4, k5, k6, k7 = jax.random.split(key, 7)

    pt = jax.jit(point_transform, static_argnames=("block_rows",))

    # --- Test 1: the module's deterministic init (eye_ / ones_), medium=3 ---
    B, N = 2, 8192
    x = jax.random.normal(k1, (B, N, 3), dtype=jnp.float32)
    w1 = jnp.eye(3, 3, dtype=jnp.float32)      # trans1.weight (medium, 3)
    b1 = jnp.ones((3,), dtype=jnp.float32)     # trans1.bias   (medium,)
    w2 = jnp.eye(3, 3, dtype=jnp.float32)      # trans2.weight (3, medium)
    b2 = jnp.ones((3,), dtype=jnp.float32)     # trans2.bias   (3,)
    y = pt(x, w1, b1, w2, b2)                  # adaptive block -> multi-step grid
    jax.block_until_ready(y)
    ref = (x @ w1.T + b1) @ w2.T + b2
    assert jnp.allclose(y, ref, atol=1e-5, rtol=1e-5), "mismatch (eye/ones init)"

    # --- Test 2: random weights, medium=5 (general fused affine) ------------
    medium = 5
    x2 = jax.random.normal(k2, (1, 8192, 3), dtype=jnp.float32)
    w1r = jax.random.normal(k3, (medium, 3), dtype=jnp.float32)
    b1r = jax.random.normal(k4, (medium,), dtype=jnp.float32)
    w2r = jax.random.normal(k5, (3, medium), dtype=jnp.float32)
    b2r = jax.random.normal(k6, (3,), dtype=jnp.float32)
    y2 = pt(x2, w1r, b1r, w2r, b2r, block_rows=16)   # forced small block / bigger grid
    jax.block_until_ready(y2)
    ref2 = (x2 @ w1r.T + b1r) @ w2r.T + b2r
    assert jnp.allclose(y2, ref2, atol=1e-4, rtol=1e-4), "mismatch (random weights)"

    # --- Test 3: point count not a multiple of 128 (tail path, no full pad) --
    x3 = jax.random.normal(k7, (2, 500, 3), dtype=jnp.float32)
    y3 = pt(x3, w1, b1, w2, b2)
    jax.block_until_ready(y3)
    ref3 = (x3 @ w1.T + b1) @ w2.T + b2
    assert jnp.allclose(y3, ref3, atol=1e-5, rtol=1e-5), "mismatch (ragged m)"

    print("KERNEL_OK")
</pallas_src>

<mosaic_0001>
module attributes {stable_mosaic.version = 11 : i64} {
  func.func @point_transform_kernel(%arg0: i32, %arg1: memref<64x384xf32, #tpu.memory_space<vmem>>, %arg2: memref<8x384xf32, #tpu.memory_space<vmem>>, %arg3: memref<64x384xf32, #tpu.memory_space<vmem>>) attributes {dimension_semantics = [#tpu.dimension_semantics<parallel>], iteration_bounds = array<i64: 2>, scalar_prefetch = 0 : i64, scratch_operands = 0 : i64, tpu.core_type = #tpu.core_type<tc>, window_params = [{transform_indices = @transform_0, window_bounds = array<i64: 64, 384>}, {pipeline_mode = #tpu.pipeline_mode<synchronous>, transform_indices = @transform_1, window_bounds = array<i64: 8, 384>}, {transform_indices = @transform_2, window_bounds = array<i64: 64, 384>}]} {
    %c0 = arith.constant 0 : index
    %c0_0 = arith.constant 0 : index
    %0 = vector.load %arg1[%c0, %c0_0] : memref<64x384xf32, #tpu.memory_space<vmem>>, vector<64x384xf32>
    %c0_1 = arith.constant 0 : index
    %c0_2 = arith.constant 0 : index
    %1 = vector.load %arg2[%c0_1, %c0_2] : memref<8x384xf32, #tpu.memory_space<vmem>>, vector<1x384xf32>
    %c1 = arith.constant 1 : index
    %c0_3 = arith.constant 0 : index
    %2 = vector.load %arg2[%c1, %c0_3] : memref<8x384xf32, #tpu.memory_space<vmem>>, vector<1x384xf32>
    %c2 = arith.constant 2 : index
    %c0_4 = arith.constant 0 : index
    %3 = vector.load %arg2[%c2, %c0_4] : memref<8x384xf32, #tpu.memory_space<vmem>>, vector<1x384xf32>
    %c3 = arith.constant 3 : index
    %c0_5 = arith.constant 0 : index
    %4 = vector.load %arg2[%c3, %c0_5] : memref<8x384xf32, #tpu.memory_space<vmem>>, vector<1x384xf32>
    %c4 = arith.constant 4 : index
    %c0_6 = arith.constant 0 : index
    %5 = vector.load %arg2[%c4, %c0_6] : memref<8x384xf32, #tpu.memory_space<vmem>>, vector<1x384xf32>
    %cst = arith.constant 5.000000e-01 : f32
    %6 = vector.broadcast %cst : f32 to vector<1x384xf32>
    %7 = arith.cmpf ogt, %5, %6 : vector<1x384xf32>
    %c5 = arith.constant 5 : index
    %c0_7 = arith.constant 0 : index
    %8 = vector.load %arg2[%c5, %c0_7] : memref<8x384xf32, #tpu.memory_space<vmem>>, vector<1x384xf32>
    %cst_8 = arith.constant 5.000000e-01 : f32
    %9 = vector.broadcast %cst_8 : f32 to vector<1x384xf32>
    %10 = arith.cmpf ogt, %8, %9 : vector<1x384xf32>
    %c2_i32 = arith.constant 2 : i32
    %11 = tpu.dynamic_rotate %0 by %c2_i32 dim 1 : vector<64x384xf32>, i32 -> vector<64x384xf32>
    %c383_i32 = arith.constant 383 : i32
    %12 = tpu.dynamic_rotate %0 by %c383_i32 dim 1 : vector<64x384xf32>, i32 -> vector<64x384xf32>
    %13 = vector.shape_cast %7 : vector<1x384xi1> to vector<1x384xi1>
    %14 = vector.broadcast %13 : vector<1x384xi1> to vector<64x384xi1>
    %15 = arith.select %14, %11, %12 : vector<64x384xi1>, vector<64x384xf32>
    %c382_i32 = arith.constant 382 : i32
    %16 = tpu.dynamic_rotate %0 by %c382_i32 dim 1 : vector<64x384xf32>, i32 -> vector<64x384xf32>
    %c1_i32 = arith.constant 1 : i32
    %17 = tpu.dynamic_rotate %0 by %c1_i32 dim 1 : vector<64x384xf32>, i32 -> vector<64x384xf32>
    %18 = vector.shape_cast %10 : vector<1x384xi1> to vector<1x384xi1>
    %19 = vector.broadcast %18 : vector<1x384xi1> to vector<64x384xi1>
    %20 = arith.select %19, %16, %17 : vector<64x384xi1>, vector<64x384xf32>
    %21 = vector.broadcast %1 : vector<1x384xf32> to vector<64x384xf32>
    %22 = arith.mulf %0, %21 : vector<64x384xf32>
    %23 = vector.broadcast %4 : vector<1x384xf32> to vector<64x384xf32>
    %24 = arith.addf %22, %23 : vector<64x384xf32>
    %25 = vector.broadcast %2 : vector<1x384xf32> to vector<64x384xf32>
    %26 = arith.mulf %15, %25 : vector<64x384xf32>
    %27 = arith.addf %24, %26 : vector<64x384xf32>
    %28 = vector.broadcast %3 : vector<1x384xf32> to vector<64x384xf32>
    %29 = arith.mulf %20, %28 : vector<64x384xf32>
    %30 = arith.addf %27, %29 : vector<64x384xf32>
    %c0_9 = arith.constant 0 : index
    %c0_10 = arith.constant 0 : index
    %31 = vector.load %arg3[%c0_9, %c0_10] : memref<64x384xf32, #tpu.memory_space<vmem>>, vector<64x384xf32>
    tpu.vector_store %arg3[%c0_9, %c0_10], %30 {strides = array<i32>} : memref<64x384xf32, #tpu.memory_space<vmem>>, vector<64x384xf32>,
    return
  }
  func.func @transform_0(%arg0: i32) -> (i32, i32) {
    %c0_i32 = arith.constant 0 : i32
    %c0_i32_0 = arith.constant 0 : i32
    return %arg0, %c0_i32 : i32, i32
  }
  func.func @transform_1(%arg0: i32) -> (i32, i32) {
    %c0_i32 = arith.constant 0 : i32
    %c0_i32_0 = arith.constant 0 : i32
    %c0_i32_1 = arith.constant 0 : i32
    return %c0_i32, %c0_i32_0 : i32, i32
  }
  func.func @transform_2(%arg0: i32) -> (i32, i32) {
    %c0_i32 = arith.constant 0 : i32
    %c0_i32_0 = arith.constant 0 : i32
    return %arg0, %c0_i32 : i32, i32
  }
}

</mosaic_0001>

<llo_original>
// kernel: point_transform.1
$region0: #{point_transform.1}
  #allocation0 [shape = 'u32[]', space=smem, size = 0x4, offset = 0x4, fixed_abs, tag = 'smem constant byte address 0x4 - core index']
  #allocation1 [shape = 'u32[144,128]{1,0:T(1,128)}', space=vmem, size = 0x12000, scoped, tag = 'internal scratch']
  %s0 = inlined_call_operand.vmem [shape: f32[128,384], index: 0, kind: input, shape index: {}]
  %s1 = inlined_call_operand.vmem [shape: f32[8,384], index: 1, kind: input, shape index: {}]
  %s2 = inlined_call_operand.vmem [shape: f32[128,384], index: 2, kind: output, shape index: {}]
  %s3 = sld [smem:[#allocation0]]
  $region41: #{point_transform.1} parent=0
    _
  %s5 = ssub.s32 1, %s3
  %s6 = scalar_select 0, %s5, %s3
  loop: start=0, step=1, limit=4
  $region2: #{point_transform.1} parent=0 // loop_pre_header
    _
  $region3: #{point_transform.1} parent=0 // loop_header
    %s8 = sphi 0, %s12
    %p9 = scmp.ge.s32.totalorder %s8, 4
    %s18 = sphi 0, %s20
    %s21 = sphi 0, %s18
    %s22 = sphi 0, %s21
    %s38 = sphi 0, %s22
    %s42 = sphi 0, %s42
    %s44 = sphi 0, %s42
    %s45 = sphi 0, %s44
    %s59 = sphi 0, %s45
    %s65 = sphi 0, %s67
    %s68 = sphi 0, %s65
    %s69 = sphi 0, %s68
    %s85 = sphi 0, %s69
  $region4: #{point_transform.1} parent=0 // loop_header_branch
    %11 = sbr.rel (%p9) target = $region8
  $region5: #{point_transform.1} parent=0 // loop_body
    %s13 = ssub.s32 %s8, 1
    %s14 = ssub.s32 %s8, 2
    %s15 = sadd.s32 %s8, 1
    %s16 = ssub.s32 %s8, %s15
    %p17 = scmp.eq.s32.totalorder %s16, 0
    %s19 = sadd.s32 %s18, 1
    %s20 = scalar_select %p17, %s18, %s19
    %p23 = pneg %p17
    %p24 = scmp.eq.s32.totalorder %s8, 1
    %p25 = por %p23, %p24
    %p26 = scmp.ne.s32.totalorder %s18, %s21
    %p27 = scmp.eq.s32.totalorder %s8, 0
    %p28 = por %p26, %p27
    %p29 = scmp.ne.s32.totalorder %s18, %s21
    %p30 = scmp.eq.s32.totalorder %s13, 1
    %p31 = por %p29, %p30
    %p32 = scmp.ne.s32.totalorder %s21, %s22
    %p33 = scmp.eq.s32.totalorder %s13, 0
    %p34 = por %p32, %p33
    %p35 = scmp.ne.s32.totalorder %s21, %s22
    %p36 = scmp.eq.s32.totalorder %s14, 1
    %p37 = por %p35, %p36
    %p39 = scmp.ne.s32.totalorder %s22, %s38
    %p40 = scmp.eq.s32.totalorder %s14, 0
    %p41 = por %p39, %p40
    %s43 = sadd.s32 %s42, 1
    %p46 = scmp.eq.s32.totalorder %s8, 1
    %p47 = scmp.ne.s32.totalorder %s42, %s44
    %p48 = scmp.eq.s32.totalorder %s8, 0
    %p49 = por %p47, %p48
    %p50 = scmp.ne.s32.totalorder %s42, %s44
    %p51 = scmp.eq.s32.totalorder %s13, 1
    %p52 = por %p50, %p51
    %p53 = scmp.ne.s32.totalorder %s44, %s45
    %p54 = scmp.eq.s32.totalorder %s13, 0
    %p55 = por %p53, %p54
    %p56 = scmp.ne.s32.totalorder %s44, %s45
    %p57 = scmp.eq.s32.totalorder %s14, 1
    %p58 = por %p56, %p57
    %p60 = scmp.ne.s32.totalorder %s45, %s59
    %p61 = scmp.eq.s32.totalorder %s14, 0
    %p62 = por %p60, %p61
    %s63 = ssub.s32 %s8, %s15
    %p64 = scmp.eq.s32.totalorder %s63, 0
    %s66 = sadd.s32 %s65, 1
    %s67 = scalar_select %p64, %s65, %s66
    %p70 = pneg %p64
    %p71 = scmp.eq.s32.totalorder %s8, 1
    %p72 = por %p70, %p71
    %p73 = scmp.ne.s32.totalorder %s65, %s68
    %p74 = scmp.eq.s32.totalorder %s8, 0
    %p75 = por %p73, %p74
    %p76 = scmp.ne.s32.totalorder %s65, %s68
    %p77 = scmp.eq.s32.totalorder %s13, 1
    %p78 = por %p76, %p77
    %p79 = scmp.ne.s32.totalorder %s68, %s69
    %p80 = scmp.eq.s32.totalorder %s13, 0
    %p81 = por %p79, %p80
    %p82 = scmp.ne.s32.totalorder %s68, %s69
    %p83 = scmp.eq.s32.totalorder %s14, 1
    %p84 = por %p82, %p83
    %p86 = scmp.ne.s32.totalorder %s69, %s85
    %p87 = scmp.eq.s32.totalorder %s14, 0
    %p88 = por %p86, %p87
    %p89 = scmp.le.s32.totalorder 1, %s8
    %p90 = scmp.lt.s32.totalorder %s8, 3
    %p91 = pnand %p89, %p90
    %p92 = pneg %p91
    // Predicated region
    $region9: #{point_transform.1} parent=5 // pred_check
      _
    $region10: #{point_transform.1} parent=5 // pred_check_branch
      %94 = sbr.rel (%p91) target = $region12
    $region11: #{point_transform.1} parent=5 // pred_region
      %s95 = ssub.s32 %s8, 1
      // Predicated region
      $region13: #{point_transform.1} parent=11 // pred_check
        %p96 = pneg %p55
      $region14: #{point_transform.1} parent=11 // pred_check_branch
        %98 = sbr.rel (%p96) target = $region16
      $region15: #{point_transform.1} parent=11 // pred_region
        _
      $region16: #{point_transform.1} parent=11 // pred_fallthru
        _
    $region12: #{point_transform.1} parent=5 // pred_fallthru
      _
    %p99 = scmp.lt.s32.totalorder %s8, 2
    // Predicated region
    $region17: #{point_transform.1} parent=5 // pred_check
      %p100 = pneg %p99
    $region18: #{point_transform.1} parent=5 // pred_check_branch
      %102 = sbr.rel (%p100) target = $region20
    $region19: #{point_transform.1} parent=5 // pred_region
      // Predicated region
      $region21: #{point_transform.1} parent=19 // pred_check
        %p103 = pneg %p28
      $region22: #{point_transform.1} parent=19 // pred_check_branch
        %105 = sbr.rel (%p103) target = $region24
      $region23: #{point_transform.1} parent=19 // pred_region
        %s106 = smul.u32 8, %s8
        %p107 = scmp.lt.s32.totalorder %s106, 15
        %s108 = scalar_select %p107, %s106, 15
        %s109 = smul.addr %s108, 3
        %s110 = smul.addr %s109, 8
        %s111 = scalar_lea.vmem %s0, %s110
        %s112 = smul.u32 8, %s8
      $region24: #{point_transform.1} parent=19 // pred_fallthru
        _
    $region20: #{point_transform.1} parent=5 // pred_fallthru
      _
    %p113 = scmp.le.s32.totalorder 1, %s8
    %p114 = scmp.lt.s32.totalorder %s8, 3
    %p115 = pnand %p113, %p114
    %p116 = pneg %p115
    // Predicated region
    $region25: #{point_transform.1} parent=5 // pred_check
      _
    $region26: #{point_transform.1} parent=5 // pred_check_branch
      %118 = sbr.rel (%p115) target = $region28
    $region27: #{point_transform.1} parent=5 // pred_region
      %s119 = ssub.s32 %s8, 1
      %s120 = smul.u32 8, %s13
      %p121 = scmp.lt.s32.totalorder %s120, 15
      %s122 = scalar_select %p121, %s120, 15
      %s123 = smul.addr %s122, 3
      %s124 = smul.addr %s123, 8
      %s125 = scalar_lea.vmem %s0, %s124
      %p126 = pneg %p34
      %p127 = pneg %p31
      %p128 = pneg %p55
      %p129 = pneg %p52
      %p130 = pneg %p81
      %p131 = pneg %p78
      %s132 = smul.u32 8, %s13
      %p133 = scmp.lt.s32.totalorder %s132, 15
      %s134 = scalar_select %p133, %s132, 15
      %s135 = smul.addr %s134, 3
      %s136 = smul.addr %s135, 8
      %s137 = scalar_lea.vmem %s2, %s136
      %s138 = smul.u32 8, %s13
      %p139 = scmp.lt.s32.totalorder %s138, 15
      %s140 = scalar_select %p139, %s138, 15
      %s141 = smul.addr %s140, 3
      %s142 = smul.addr %s141, 8
      %s143 = scalar_lea.vmem %s0, %s142
      %s144 = smul.u32 8, %s13
      %s145 = smul.u32 8, %s13
      %p146 = scmp.lt.s32.totalorder %s145, 15
      %s147 = scalar_select %p146, %s145, 15
      %s148 = smul.addr %s147, 3
      %s149 = smul.addr %s148, 8
      %s150 = scalar_lea.vmem %s2, %s149
      %s151 = smul.u32 8, %s13
      %v152 = vld [vmem:[%s143] sm:$0xff]
      %v153 = vld [vmem:[%s143 + $0x8] sm:$0xff]
      %v154 = vld [vmem:[%s143 + $0x10] sm:$0xff]
      %v155 = vld [vmem:[%s143 + $0x18] sm:$0xff]
      %v156 = vld [vmem:[%s143 + $0x20] sm:$0xff]
      %v157 = vld [vmem:[%s143 + $0x28] sm:$0xff]
      %v158 = vld [vmem:[%s143 + $0x30] sm:$0xff]
      %v159 = vld [vmem:[%s143 + $0x38] sm:$0xff]
      %v160 = vld [vmem:[%s143 + $0x40] sm:$0xff]
      %v161 = vld [vmem:[%s143 + $0x48] sm:$0xff]
      %v162 = vld [vmem:[%s143 + $0x50] sm:$0xff]
      %v163 = vld [vmem:[%s143 + $0x58] sm:$0xff]
      %v164 = vld [vmem:[%s143 + $0x60] sm:$0xff]
      %v165 = vld [vmem:[%s143 + $0x68] sm:$0xff]
      %v166 = vld [vmem:[%s143 + $0x70] sm:$0xff]
      %v167 = vld [vmem:[%s143 + $0x78] sm:$0xff]
      %v168 = vld [vmem:[%s143 + $0x80] sm:$0xff]
      %v169 = vld [vmem:[%s143 + $0x88] sm:$0xff]
      %v170 = vld [vmem:[%s143 + $0x90] sm:$0xff]
      %v171 = vld [vmem:[%s143 + $0x98] sm:$0xff]
      %v172 = vld [vmem:[%s143 + $0xa0] sm:$0xff]
      %v173 = vld [vmem:[%s143 + $0xa8] sm:$0xff]
      %v174 = vld [vmem:[%s143 + $0xb0] sm:$0xff]
      %v175 = vld [vmem:[%s143 + $0xb8] sm:$0xff]
      %v176 = vld [vmem:[%s1] ss:$8 sm:$0x7]
      %s177 = scalar_lea.vmem %s1, 1
      %v178 = vld [vmem:[%s177] ss:$8 sm:$0x7]
      %s179 = scalar_lea.vmem %s1, 2
      %v180 = vld [vmem:[%s179] ss:$8 sm:$0x7]
      %s181 = scalar_lea.vmem %s1, 3
      %v182 = vld [vmem:[%s181] ss:$8 sm:$0x7]
      %s183 = scalar_lea.vmem %s1, 4
      %v184 = vld [vmem:[%s183] ss:$8 sm:$0x7]
      %vm185 = vcmp.gt.f32.partialorder %v184, 0.5
      %s186 = scalar_lea.vmem %s1, 5
      %v187 = vld [vmem:[%s186] ss:$8 sm:$0x7]
      %vm188 = vcmp.gt.f32.partialorder %v187, 0.5
      %189 = vrot.lane.b32.xlu0 %v152, 2
      %v190 = vpop.permute.xlu0 %189
      %191 = vrot.lane.b32.xlu0 %v155, 2
      %v192 = vpop.permute.xlu0 %191
      %193 = vrot.lane.b32.xlu0 %v158, 2
      %v194 = vpop.permute.xlu0 %193
      %195 = vrot.lane.b32.xlu0 %v161, 2
      %v196 = vpop.permute.xlu0 %195
      %197 = vrot.lane.b32.xlu0 %v164, 2
      %v198 = vpop.permute.xlu0 %197
      %199 = vrot.lane.b32.xlu0 %v167, 2
      %v200 = vpop.permute.xlu0 %199
      %201 = vrot.lane.b32.xlu0 %v170, 2
      %v202 = vpop.permute.xlu0 %201
      %203 = vrot.lane.b32.xlu0 %v173, 2
      %v204 = vpop.permute.xlu0 %203
      %205 = vrot.lane.b32.xlu0 %v153, 2
      %v206 = vpop.permute.xlu0 %205
      %207 = vrot.lane.b32.xlu0 %v156, 2
      %v208 = vpop.permute.xlu0 %207
      %209 = vrot.lane.b32.xlu0 %v159, 2
      %v210 = vpop.permute.xlu0 %209
      %211 = vrot.lane.b32.xlu0 %v162, 2
      %v212 = vpop.permute.xlu0 %211
      %213 = vrot.lane.b32.xlu0 %v165, 2
      %v214 = vpop.permute.xlu0 %213
      %215 = vrot.lane.b32.xlu0 %v168, 2
      %v216 = vpop.permute.xlu0 %215
      %217 = vrot.lane.b32.xlu0 %v171, 2
      %v218 = vpop.permute.xlu0 %217
      %219 = vrot.lane.b32.xlu0 %v174, 2
      %v220 = vpop.permute.xlu0 %219
      %221 = vrot.lane.b32.xlu0 %v154, 2
      %v222 = vpop.permute.xlu0 %221
      %223 = vrot.lane.b32.xlu0 %v157, 2
      %v224 = vpop.permute.xlu0 %223
      %225 = vrot.lane.b32.xlu0 %v160, 2
      %v226 = vpop.permute.xlu0 %225
      %227 = vrot.lane.b32.xlu0 %v163, 2
      %v228 = vpop.permute.xlu0 %227
      %229 = vrot.lane.b32.xlu0 %v166, 2
      %v230 = vpop.permute.xlu0 %229
      %231 = vrot.lane.b32.xlu0 %v169, 2
      %v232 = vpop.permute.xlu0 %231
      %233 = vrot.lane.b32.xlu0 %v172, 2
      %v234 = vpop.permute.xlu0 %233
      %235 = vrot.lane.b32.xlu0 %v175, 2
      %v236 = vpop.permute.xlu0 %235
      %v237 = vlaneseq
      %v238 = vand.u32 %v237, 127
      %vm239 = vcmp.lt.s32.totalorder %v238, 2
      %v240 = vsel %vm239, %v206, %v222
      %v241 = vsel %vm239, %v208, %v224
      %v242 = vsel %vm239, %v210, %v226
      %v243 = vsel %vm239, %v212, %v228
      %v244 = vsel %vm239, %v214, %v230
      %v245 = vsel %vm239, %v216, %v232
      %v246 = vsel %vm239, %v218, %v234
      %v247 = vsel %vm239, %v220, %v236
      %v248 = vsel %vm239, %v190, %v206
      %v249 = vsel %vm239, %v192, %v208
      %v250 = vsel %vm239, %v194, %v210
      %v251 = vsel %vm239, %v196, %v212
      %v252 = vsel %vm239, %v198, %v214
      %v253 = vsel %vm239, %v200, %v216
      %v254 = vsel %vm239, %v202, %v218
      %v255 = vsel %vm239, %v204, %v220
      %v256 = vsel %vm239, %v222, %v190
      %v257 = vsel %vm239, %v224, %v192
      %v258 = vsel %vm239, %v226, %v194
      %v259 = vsel %vm239, %v228, %v196
      %v260 = vsel %vm239, %v230, %v198
      %v261 = vsel %vm239, %v232, %v200
      %v262 = vsel %vm239, %v234, %v202
      %v263 = vsel %vm239, %v236, %v204
      %264 = vrot.lane.b32.xlu0 %v152, 127
      %v265 = vpop.permute.xlu0 %264
      %266 = vrot.lane.b32.xlu0 %v155, 127
      %v267 = vpop.permute.xlu0 %266
      %268 = vrot.lane.b32.xlu0 %v158, 127
      %v269 = vpop.permute.xlu0 %268
      %270 = vrot.lane.b32.xlu0 %v161, 127
      %v271 = vpop.permute.xlu0 %270
      %272 = vrot.lane.b32.xlu0 %v164, 127
      %v273 = vpop.permute.xlu0 %272
      %274 = vrot.lane.b32.xlu0 %v167, 127
      %v275 = vpop.permute.xlu0 %274
      %276 = vrot.lane.b32.xlu0 %v170, 127
      %v277 = vpop.permute.xlu0 %276
      %278 = vrot.lane.b32.xlu0 %v173, 127
      %v279 = vpop.permute.xlu0 %278
      %280 = vrot.lane.b32.xlu0 %v153, 127
      %v281 = vpop.permute.xlu0 %280
      %282 = vrot.lane.b32.xlu0 %v156, 127
      %v283 = vpop.permute.xlu0 %282
      %284 = vrot.lane.b32.xlu0 %v159, 127
      %v285 = vpop.permute.xlu0 %284
      %286 = vrot.lane.b32.xlu0 %v162, 127
      %v287 = vpop.permute.xlu0 %286
      %288 = vrot.lane.b32.xlu0 %v165, 127
      %v289 = vpop.permute.xlu0 %288
      %290 = vrot.lane.b32.xlu0 %v168, 127
      %v291 = vpop.permute.xlu0 %290
      %292 = vrot.lane.b32.xlu0 %v171, 127
      %v293 = vpop.permute.xlu0 %292
      %294 = vrot.lane.b32.xlu0 %v174, 127
      %v295 = vpop.permute.xlu0 %294
      %296 = vrot.lane.b32.xlu0 %v154, 127
      %v297 = vpop.permute.xlu0 %296
      %298 = vrot.lane.b32.xlu0 %v157, 127
      %v299 = vpop.permute.xlu0 %298
      %300 = vrot.lane.b32.xlu0 %v160, 127
      %v301 = vpop.permute.xlu0 %300
      %302 = vrot.lane.b32.xlu0 %v163, 127
      %v303 = vpop.permute.xlu0 %302
      %304 = vrot.lane.b32.xlu0 %v166, 127
      %v305 = vpop.permute.xlu0 %304
      %306 = vrot.lane.b32.xlu0 %v169, 127
      %v307 = vpop.permute.xlu0 %306
      %308 = vrot.lane.b32.xlu0 %v172, 127
      %v309 = vpop.permute.xlu0 %308
      %310 = vrot.lane.b32.xlu0 %v175, 127
      %v311 = vpop.permute.xlu0 %310
      %vm312 = vcmp.lt.s32.totalorder %v238, 127
      %v313 = vsel %vm312, %v281, %v297
      %v314 = vsel %vm312, %v283, %v299
      %v315 = vsel %vm312, %v285, %v301
      %v316 = vsel %vm312, %v287, %v303
      %v317 = vsel %vm312, %v289, %v305
      %v318 = vsel %vm312, %v291, %v307
      %v319 = vsel %vm312, %v293, %v309
      %v320 = vsel %vm312, %v295, %v311
      %v321 = vsel %vm312, %v265, %v281
      %v322 = vsel %vm312, %v267, %v283
      %v323 = vsel %vm312, %v269, %v285
      %v324 = vsel %vm312, %v271, %v287
      %v325 = vsel %vm312, %v273, %v289
      %v326 = vsel %vm312, %v275, %v291
      %v327 = vsel %vm312, %v277, %v293
      %v328 = vsel %vm312, %v279, %v295
      %v329 = vsel %vm312, %v297, %v265
      %v330 = vsel %vm312, %v299, %v267
      %v331 = vsel %vm312, %v301, %v269
      %v332 = vsel %vm312, %v303, %v271
      %v333 = vsel %vm312, %v305, %v273
      %v334 = vsel %vm312, %v307, %v275
      %v335 = vsel %vm312, %v309, %v277
      %v336 = vsel %vm312, %v311, %v279
      %v337 = vsel %vm185, 1, 0
      %v338 = vlaneseq
      %v339 = vshrl.u32 %v338, 7
      %v340 = vsub.s32 0, %v339
      %v341 = vrot.slane %v337, %v340
      %v342 = vlaneseq
      %v343 = vshrl.u32 %v342, 7
      %v344 = vsub.s32 1, %v343
      %v345 = vrot.slane %v337, %v344
      %v346 = vlaneseq
      %v347 = vshrl.u32 %v346, 7
      %v348 = vsub.s32 2, %v347
      %v349 = vrot.slane %v337, %v348
      %vm350 = vcmp.eq.s32.totalorder %v341, 1
      %vm351 = vcmp.eq.s32.totalorder %v345, 1
      %vm352 = vcmp.eq.s32.totalorder %v349, 1
      %v353 = vsel %vm350, %v256, %v321
      %v354 = vsel %vm351, %v248, %v313
      %v355 = vsel %vm352, %v240, %v329
      %v356 = vsel %vm350, %v257, %v322
      %v357 = vsel %vm351, %v249, %v314
      %v358 = vsel %vm352, %v241, %v330
      %v359 = vsel %vm350, %v258, %v323
      %v360 = vsel %vm351, %v250, %v315
      %v361 = vsel %vm352, %v242, %v331
      %v362 = vsel %vm350, %v259, %v324
      %v363 = vsel %vm351, %v251, %v316
      %v364 = vsel %vm352, %v243, %v332
      %v365 = vsel %vm350, %v260, %v325
      %v366 = vsel %vm351, %v252, %v317
      %v367 = vsel %vm352, %v244, %v333
      %v368 = vsel %vm350, %v261, %v326
      %v369 = vsel %vm351, %v253, %v318
      %v370 = vsel %vm352, %v245, %v334
      %v371 = vsel %vm350, %v262, %v327
      %v372 = vsel %vm351, %v254, %v319
      %v373 = vsel %vm352, %v246, %v335
      %v374 = vsel %vm350, %v263, %v328
      %v375 = vsel %vm351, %v255, %v320
      %v376 = vsel %vm352, %v247, %v336
      %377 = vrot.lane.b32.xlu0 %v152, 126
      %v378 = vpop.permute.xlu0 %377
      %379 = vrot.lane.b32.xlu0 %v155, 126
      %v380 = vpop.permute.xlu0 %379
      %381 = vrot.lane.b32.xlu0 %v158, 126
      %v382 = vpop.permute.xlu0 %381
      %383 = vrot.lane.b32.xlu0 %v161, 126
      %v384 = vpop.permute.xlu0 %383
      %385 = vrot.lane.b32.xlu0 %v164, 126
      %v386 = vpop.permute.xlu0 %385
      %387 = vrot.lane.b32.xlu0 %v167, 126
      %v388 = vpop.permute.xlu0 %387
      %389 = vrot.lane.b32.xlu0 %v170, 126
      %v390 = vpop.permute.xlu0 %389
      %391 = vrot.lane.b32.xlu0 %v173, 126
      %v392 = vpop.permute.xlu0 %391
      %393 = vrot.lane.b32.xlu0 %v153, 126
      %v394 = vpop.permute.xlu0 %393
      %395 = vrot.lane.b32.xlu0 %v156, 126
      %v396 = vpop.permute.xlu0 %395
      %397 = vrot.lane.b32.xlu0 %v159, 126
      %v398 = vpop.permute.xlu0 %397
      %399 = vrot.lane.b32.xlu0 %v162, 126
      %v400 = vpop.permute.xlu0 %399
      %401 = vrot.lane.b32.xlu0 %v165, 126
      %v402 = vpop.permute.xlu0 %401
      %403 = vrot.lane.b32.xlu0 %v168, 126
      %v404 = vpop.permute.xlu0 %403
      %405 = vrot.lane.b32.xlu0 %v171, 126
      %v406 = vpop.permute.xlu0 %405
      %407 = vrot.lane.b32.xlu0 %v174, 126
      %v408 = vpop.permute.xlu0 %407
      %409 = vrot.lane.b32.xlu0 %v154, 126
      %v410 = vpop.permute.xlu0 %409
      %411 = vrot.lane.b32.xlu0 %v157, 126
      %v412 = vpop.permute.xlu0 %411
      %413 = vrot.lane.b32.xlu0 %v160, 126
      %v414 = vpop.permute.xlu0 %413
      %415 = vrot.lane.b32.xlu0 %v163, 126
      %v416 = vpop.permute.xlu0 %415
      %417 = vrot.lane.b32.xlu0 %v166, 126
      %v418 = vpop.permute.xlu0 %417
      %419 = vrot.lane.b32.xlu0 %v169, 126
      %v420 = vpop.permute.xlu0 %419
      %421 = vrot.lane.b32.xlu0 %v172, 126
      %v422 = vpop.permute.xlu0 %421
      %423 = vrot.lane.b32.xlu0 %v175, 126
      %v424 = vpop.permute.xlu0 %423
      %vm425 = vcmp.lt.s32.totalorder %v238, 126
      %v426 = vsel %vm425, %v394, %v410
      %v427 = vsel %vm425, %v396, %v412
      %v428 = vsel %vm425, %v398, %v414
      %v429 = vsel %vm425, %v400, %v416
      %v430 = vsel %vm425, %v402, %v418
      %v431 = vsel %vm425, %v404, %v420
      %v432 = vsel %vm425, %v406, %v422
      %v433 = vsel %vm425, %v408, %v424
      %v434 = vsel %vm425, %v378, %v394
      %v435 = vsel %vm425, %v380, %v396
      %v436 = vsel %vm425, %v382, %v398
      %v437 = vsel %vm425, %v384, %v400
      %v438 = vsel %vm425, %v386, %v402
      %v439 = vsel %vm425, %v388, %v404
      %v440 = vsel %vm425, %v390, %v406
      %v441 = vsel %vm425, %v392, %v408
      %v442 = vsel %vm425, %v410, %v378
      %v443 = vsel %vm425, %v412, %v380
      %v444 = vsel %vm425, %v414, %v382
      %v445 = vsel %vm425, %v416, %v384
      %v446 = vsel %vm425, %v418, %v386
      %v447 = vsel %vm425, %v420, %v388
      %v448 = vsel %vm425, %v422, %v390
      %v449 = vsel %vm425, %v424, %v392
      %450 = vrot.lane.b32.xlu0 %v152, 1
      %v451 = vpop.permute.xlu0 %450
      %452 = vrot.lane.b32.xlu0 %v155, 1
      %v453 = vpop.permute.xlu0 %452
      %454 = vrot.lane.b32.xlu0 %v158, 1
      %v455 = vpop.permute.xlu0 %454
      %456 = vrot.lane.b32.xlu0 %v161, 1
      %v457 = vpop.permute.xlu0 %456
      %458 = vrot.lane.b32.xlu0 %v164, 1
      %v459 = vpop.permute.xlu0 %458
      %460 = vrot.lane.b32.xlu0 %v167, 1
      %v461 = vpop.permute.xlu0 %460
      %462 = vrot.lane.b32.xlu0 %v170, 1
      %v463 = vpop.permute.xlu0 %462
      %464 = vrot.lane.b32.xlu0 %v173, 1
      %v465 = vpop.permute.xlu0 %464
      %466 = vrot.lane.b32.xlu0 %v153, 1
      %v467 = vpop.permute.xlu0 %466
      %468 = vrot.lane.b32.xlu0 %v156, 1
      %v469 = vpop.permute.xlu0 %468
      %470 = vrot.lane.b32.xlu0 %v159, 1
      %v471 = vpop.permute.xlu0 %470
      %472 = vrot.lane.b32.xlu0 %v162, 1
      %v473 = vpop.permute.xlu0 %472
      %474 = vrot.lane.b32.xlu0 %v165, 1
      %v475 = vpop.permute.xlu0 %474
      %476 = vrot.lane.b32.xlu0 %v168, 1
      %v477 = vpop.permute.xlu0 %476
      %478 = vrot.lane.b32.xlu0 %v171, 1
      %v479 = vpop.permute.xlu0 %478
      %480 = vrot.lane.b32.xlu0 %v174, 1
      %v481 = vpop.permute.xlu0 %480
      %482 = vrot.lane.b32.xlu0 %v154, 1
      %v483 = vpop.permute.xlu0 %482
      %484 = vrot.lane.b32.xlu0 %v157, 1
      %v485 = vpop.permute.xlu0 %484
      %486 = vrot.lane.b32.xlu0 %v160, 1
      %v487 = vpop.permute.xlu0 %486
      %488 = vrot.lane.b32.xlu0 %v163, 1
      %v489 = vpop.permute.xlu0 %488
      %490 = vrot.lane.b32.xlu0 %v166, 1
      %v491 = vpop.permute.xlu0 %490
      %492 = vrot.lane.b32.xlu0 %v169, 1
      %v493 = vpop.permute.xlu0 %492
      %494 = vrot.lane.b32.xlu0 %v172, 1
      %v495 = vpop.permute.xlu0 %494
      %496 = vrot.lane.b32.xlu0 %v175, 1
      %v497 = vpop.permute.xlu0 %496
      %vm498 = vcmp.lt.s32.totalorder %v238, 1
      %v499 = vsel %vm498, %v467, %v483
      %v500 = vsel %vm498, %v469, %v485
      %v501 = vsel %vm498, %v471, %v487
      %v502 = vsel %vm498, %v473, %v489
      %v503 = vsel %vm498, %v475, %v491
      %v504 = vsel %vm498, %v477, %v493
      %v505 = vsel %vm498, %v479, %v495
      %v506 = vsel %vm498, %v481, %v497
      %v507 = vsel %vm498, %v451, %v467
      %v508 = vsel %vm498, %v453, %v469
      %v509 = vsel %vm498, %v455, %v471
      %v510 = vsel %vm498, %v457, %v473
      %v511 = vsel %vm498, %v459, %v475
      %v512 = vsel %vm498, %v461, %v477
      %v513 = vsel %vm498, %v463, %v479
      %v514 = vsel %vm498, %v465, %v481
      %v515 = vsel %vm498, %v483, %v451
      %v516 = vsel %vm498, %v485, %v453
      %v517 = vsel %vm498, %v487, %v455
      %v518 = vsel %vm498, %v489, %v457
      %v519 = vsel %vm498, %v491, %v459
      %v520 = vsel %vm498, %v493, %v461
      %v521 = vsel %vm498, %v495, %v463
      %v522 = vsel %vm498, %v497, %v465
      %v523 = vsel %vm188, 1, 0
      %v524 = vlaneseq
      %v525 = vshrl.u32 %v524, 7
      %v526 = vsub.s32 0, %v525
      %v527 = vrot.slane %v523, %v526
      %v528 = vlaneseq
      %v529 = vshrl.u32 %v528, 7
      %v530 = vsub.s32 1, %v529
      %v531 = vrot.slane %v523, %v530
      %v532 = vlaneseq
      %v533 = vshrl.u32 %v532, 7
      %v534 = vsub.s32 2, %v533
      %v535 = vrot.slane %v523, %v534
      %vm536 = vcmp.eq.s32.totalorder %v527, 1
      %vm537 = vcmp.eq.s32.totalorder %v531, 1
      %vm538 = vcmp.eq.s32.totalorder %v535, 1
      %v539 = vsel %vm536, %v434, %v515
      %v540 = vsel %vm537, %v426, %v507
      %v541 = vsel %vm538, %v442, %v499
      %v542 = vsel %vm536, %v435, %v516
      %v543 = vsel %vm537, %v427, %v508
      %v544 = vsel %vm538, %v443, %v500
      %v545 = vsel %vm536, %v436, %v517
      %v546 = vsel %vm537, %v428, %v509
      %v547 = vsel %vm538, %v444, %v501
      %v548 = vsel %vm536, %v437, %v518
      %v549 = vsel %vm537, %v429, %v510
      %v550 = vsel %vm538, %v445, %v502
      %v551 = vsel %vm536, %v438, %v519
      %v552 = vsel %vm537, %v430, %v511
      %v553 = vsel %vm538, %v446, %v503
      %v554 = vsel %vm536, %v439, %v520
      %v555 = vsel %vm537, %v431, %v512
      %v556 = vsel %vm538, %v447, %v504
      %v557 = vsel %vm536, %v440, %v521
      %v558 = vsel %vm537, %v432, %v513
      %v559 = vsel %vm538, %v448, %v505
      %v560 = vsel %vm536, %v441, %v522
      %v561 = vsel %vm537, %v433, %v514
      %v562 = vsel %vm538, %v449, %v506
      %v564 = vlaneseq
      %v565 = vshrl.u32 %v564, 7
      %v566 = vsub.s32 0, %v565
      %v567 = vrot.slane %v176, %v566
      %v568 = vlaneseq
      %v569 = vshrl.u32 %v568, 7
      %v570 = vsub.s32 1, %v569
      %v571 = vrot.slane %v176, %v570
      %v572 = vlaneseq
      %v573 = vshrl.u32 %v572, 7
      %v574 = vsub.s32 2, %v573
      %v575 = vrot.slane %v176, %v574
      %v579 = vmul.f32 %v152, %v567
      %v580 = vmul.f32 %v153, %v571
      %v581 = vmul.f32 %v154, %v575
      %v582 = vmul.f32 %v155, %v567
      %v583 = vmul.f32 %v156, %v571
      %v584 = vmul.f32 %v157, %v575
      %v585 = vmul.f32 %v158, %v567
      %v586 = vmul.f32 %v159, %v571
      %v587 = vmul.f32 %v160, %v575
      %v588 = vmul.f32 %v161, %v567
      %v589 = vmul.f32 %v162, %v571
      %v590 = vmul.f32 %v163, %v575
      %v591 = vmul.f32 %v164, %v567
      %v592 = vmul.f32 %v165, %v571
      %v593 = vmul.f32 %v166, %v575
      %v594 = vmul.f32 %v167, %v567
      %v595 = vmul.f32 %v168, %v571
      %v596 = vmul.f32 %v169, %v575
      %v597 = vmul.f32 %v170, %v567
      %v598 = vmul.f32 %v171, %v571
      %v599 = vmul.f32 %v172, %v575
      %v600 = vmul.f32 %v173, %v567
      %v601 = vmul.f32 %v174, %v571
      %v602 = vmul.f32 %v175, %v575
      %v604 = vlaneseq
      %v605 = vshrl.u32 %v604, 7
      %v606 = vsub.s32 0, %v605
      %v607 = vrot.slane %v182, %v606
      %v608 = vlaneseq
      %v609 = vshrl.u32 %v608, 7
      %v610 = vsub.s32 1, %v609
      %v611 = vrot.slane %v182, %v610
      %v612 = vlaneseq
      %v613 = vshrl.u32 %v612, 7
      %v614 = vsub.s32 2, %v613
      %v615 = vrot.slane %v182, %v614
      %v619 = vadd.f32 %v579, %v607
      %v620 = vadd.f32 %v580, %v611
      %v621 = vadd.f32 %v581, %v615
      %v622 = vadd.f32 %v582, %v607
      %v623 = vadd.f32 %v583, %v611
      %v624 = vadd.f32 %v584, %v615
      %v625 = vadd.f32 %v585, %v607
      %v626 = vadd.f32 %v586, %v611
      %v627 = vadd.f32 %v587, %v615
      %v628 = vadd.f32 %v588, %v607
      %v629 = vadd.f32 %v589, %v611
      %v630 = vadd.f32 %v590, %v615
      %v631 = vadd.f32 %v591, %v607
      %v632 = vadd.f32 %v592, %v611
      %v633 = vadd.f32 %v593, %v615
      %v634 = vadd.f32 %v594, %v607
      %v635 = vadd.f32 %v595, %v611
      %v636 = vadd.f32 %v596, %v615
      %v637 = vadd.f32 %v597, %v607
      %v638 = vadd.f32 %v598, %v611
      %v639 = vadd.f32 %v599, %v615
      %v640 = vadd.f32 %v600, %v607
      %v641 = vadd.f32 %v601, %v611
      %v642 = vadd.f32 %v602, %v615
      %v644 = vlaneseq
      %v645 = vshrl.u32 %v644, 7
      %v646 = vsub.s32 0, %v645
      %v647 = vrot.slane %v178, %v646
      %v648 = vlaneseq
      %v649 = vshrl.u32 %v648, 7
      %v650 = vsub.s32 1, %v649
      %v651 = vrot.slane %v178, %v650
      %v652 = vlaneseq
      %v653 = vshrl.u32 %v652, 7
      %v654 = vsub.s32 2, %v653
      %v655 = vrot.slane %v178, %v654
      %v659 = vmul.f32 %v353, %v647
      %v660 = vmul.f32 %v354, %v651
      %v661 = vmul.f32 %v355, %v655
      %v662 = vmul.f32 %v356, %v647
      %v663 = vmul.f32 %v357, %v651
      %v664 = vmul.f32 %v358, %v655
      %v665 = vmul.f32 %v359, %v647
      %v666 = vmul.f32 %v360, %v651
      %v667 = vmul.f32 %v361, %v655
      %v668 = vmul.f32 %v362, %v647
      %v669 = vmul.f32 %v363, %v651
      %v670 = vmul.f32 %v364, %v655
      %v671 = vmul.f32 %v365, %v647
      %v672 = vmul.f32 %v366, %v651
      %v673 = vmul.f32 %v367, %v655
      %v674 = vmul.f32 %v368, %v647
      %v675 = vmul.f32 %v369, %v651
      %v676 = vmul.f32 %v370, %v655
      %v677 = vmul.f32 %v371, %v647
      %v678 = vmul.f32 %v372, %v651
      %v679 = vmul.f32 %v373, %v655
      %v680 = vmul.f32 %v374, %v647
      %v681 = vmul.f32 %v375, %v651
      %v682 = vmul.f32 %v376, %v655
      %v683 = vadd.f32 %v619, %v659
      %v684 = vadd.f32 %v620, %v660
      %v685 = vadd.f32 %v621, %v661
      %v686 = vadd.f32 %v622, %v662
      %v687 = vadd.f32 %v623, %v663
      %v688 = vadd.f32 %v624, %v664
      %v689 = vadd.f32 %v625, %v665
      %v690 = vadd.f32 %v626, %v666
      %v691 = vadd.f32 %v627, %v667
      %v692 = vadd.f32 %v628, %v668
      %v693 = vadd.f32 %v629, %v669
      %v694 = vadd.f32 %v630, %v670
      %v695 = vadd.f32 %v631, %v671
      %v696 = vadd.f32 %v632, %v672
      %v697 = vadd.f32 %v633, %v673
      %v698 = vadd.f32 %v634, %v674
      %v699 = vadd.f32 %v635, %v675
      %v700 = vadd.f32 %v636, %v676
      %v701 = vadd.f32 %v637, %v677
      %v702 = vadd.f32 %v638, %v678
      %v703 = vadd.f32 %v639, %v679
      %v704 = vadd.f32 %v640, %v680
      %v705 = vadd.f32 %v641, %v681
      %v706 = vadd.f32 %v642, %v682
      %v708 = vlaneseq
      %v709 = vshrl.u32 %v708, 7
      %v710 = vsub.s32 0, %v709
      %v711 = vrot.slane %v180, %v710
      %v712 = vlaneseq
      %v713 = vshrl.u32 %v712, 7
      %v714 = vsub.s32 1, %v713
      %v715 = vrot.slane %v180, %v714
      %v716 = vlaneseq
      %v717 = vshrl.u32 %v716, 7
      %v718 = vsub.s32 2, %v717
      %v719 = vrot.slane %v180, %v718
      %v723 = vmul.f32 %v539, %v711
      %v724 = vmul.f32 %v540, %v715
      %v725 = vmul.f32 %v541, %v719
      %v726 = vmul.f32 %v542, %v711
      %v727 = vmul.f32 %v543, %v715
      %v728 = vmul.f32 %v544, %v719
      %v729 = vmul.f32 %v545, %v711
      %v730 = vmul.f32 %v546, %v715
      %v731 = vmul.f32 %v547, %v719
      %v732 = vmul.f32 %v548, %v711
      %v733 = vmul.f32 %v549, %v715
      %v734 = vmul.f32 %v550, %v719
      %v735 = vmul.f32 %v551, %v711
      %v736 = vmul.f32 %v552, %v715
      %v737 = vmul.f32 %v553, %v719
      %v738 = vmul.f32 %v554, %v711
      %v739 = vmul.f32 %v555, %v715
      %v740 = vmul.f32 %v556, %v719
      %v741 = vmul.f32 %v557, %v711
      %v742 = vmul.f32 %v558, %v715
      %v743 = vmul.f32 %v559, %v719
      %v744 = vmul.f32 %v560, %v711
      %v745 = vmul.f32 %v561, %v715
      %v746 = vmul.f32 %v562, %v719
      %v747 = vadd.f32 %v683, %v723
      %v748 = vadd.f32 %v684, %v724
      %v749 = vadd.f32 %v685, %v725
      %v750 = vadd.f32 %v686, %v726
      %v751 = vadd.f32 %v687, %v727
      %v752 = vadd.f32 %v688, %v728
      %v753 = vadd.f32 %v689, %v729
      %v754 = vadd.f32 %v690, %v730
      %v755 = vadd.f32 %v691, %v731
      %v756 = vadd.f32 %v692, %v732
      %v757 = vadd.f32 %v693, %v733
      %v758 = vadd.f32 %v694, %v734
      %v759 = vadd.f32 %v695, %v735
      %v760 = vadd.f32 %v696, %v736
      %v761 = vadd.f32 %v697, %v737
      %v762 = vadd.f32 %v698, %v738
      %v763 = vadd.f32 %v699, %v739
      %v764 = vadd.f32 %v700, %v740
      %v765 = vadd.f32 %v701, %v741
      %v766 = vadd.f32 %v702, %v742
      %v767 = vadd.f32 %v703, %v743
      %v768 = vadd.f32 %v704, %v744
      %v769 = vadd.f32 %v705, %v745
      %v770 = vadd.f32 %v706, %v746
      %771 = vst [vmem:[%s150] sm:$0xff] %v747
      %772 = vst [vmem:[%s150 + $0x8] sm:$0xff] %v748
      %773 = vst [vmem:[%s150 + $0x10] sm:$0xff] %v749
      %774 = vst [vmem:[%s150 + $0x18] sm:$0xff] %v750
      %775 = vst [vmem:[%s150 + $0x20] sm:$0xff] %v751
      %776 = vst [vmem:[%s150 + $0x28] sm:$0xff] %v752
      %777 = vst [vmem:[%s150 + $0x30] sm:$0xff] %v753
      %778 = vst [vmem:[%s150 + $0x38] sm:$0xff] %v754
      %779 = vst [vmem:[%s150 + $0x40] sm:$0xff] %v755
      %780 = vst [vmem:[%s150 + $0x48] sm:$0xff] %v756
      %781 = vst [vmem:[%s150 + $0x50] sm:$0xff] %v757
      %782 = vst [vmem:[%s150 + $0x58] sm:$0xff] %v758
      %783 = vst [vmem:[%s150 + $0x60] sm:$0xff] %v759
      %784 = vst [vmem:[%s150 + $0x68] sm:$0xff] %v760
      %785 = vst [vmem:[%s150 + $0x70] sm:$0xff] %v761
      %786 = vst [vmem:[%s150 + $0x78] sm:$0xff] %v762
      %787 = vst [vmem:[%s150 + $0x80] sm:$0xff] %v763
      %788 = vst [vmem:[%s150 + $0x88] sm:$0xff] %v764
      %789 = vst [vmem:[%s150 + $0x90] sm:$0xff] %v765
      %790 = vst [vmem:[%s150 + $0x98] sm:$0xff] %v766
      %791 = vst [vmem:[%s150 + $0xa0] sm:$0xff] %v767
      %792 = vst [vmem:[%s150 + $0xa8] sm:$0xff] %v768
      %793 = vst [vmem:[%s150 + $0xb0] sm:$0xff] %v769
      %794 = vst [vmem:[%s150 + $0xb8] sm:$0xff] %v770
      %s795 = smul.u32 8, %s13
      %p796 = scmp.lt.s32.totalorder %s795, 15
      %s797 = scalar_select %p796, %s795, 15
      %s798 = smul.addr %s797, 3
      %s799 = smul.addr %s798, 8
      %s800 = scalar_lea.vmem %s2, %s799
      // Predicated region
      $region29: #{point_transform.1} parent=27 // pred_check
        %p801 = pneg %p78
      $region30: #{point_transform.1} parent=27 // pred_check_branch
        %803 = sbr.rel (%p801) target = $region32
      $region31: #{point_transform.1} parent=27 // pred_region
        %s804 = smul.u32 8, %s13
      $region32: #{point_transform.1} parent=27 // pred_fallthru
        _
    $region28: #{point_transform.1} parent=5 // pred_fallthru
      _
    %p805 = scmp.le.s32.totalorder 2, %s8
    // Predicated region
    $region33: #{point_transform.1} parent=5 // pred_check
      %p806 = pneg %p805
    $region34: #{point_transform.1} parent=5 // pred_check_branch
      %808 = sbr.rel (%p806) target = $region36
    $region35: #{point_transform.1} parent=5 // pred_region
      %s809 = ssub.s32 %s8, 2
      // Predicated region
      $region37: #{point_transform.1} parent=35 // pred_check
        %p810 = pneg %p84
      $region38: #{point_transform.1} parent=35 // pred_check_branch
        %812 = sbr.rel (%p810) target = $region40
      $region39: #{point_transform.1} parent=35 // pred_region
        %s813 = smul.u32 8, %s14
        %p814 = scmp.lt.s32.totalorder %s813, 15
        %s815 = scalar_select %p814, %s813, 15
        %s816 = smul.addr %s815, 3
        %s817 = smul.addr %s816, 8
        %s818 = scalar_lea.vmem %s2, %s817
      $region40: #{point_transform.1} parent=35 // pred_fallthru
        _
    $region36: #{point_transform.1} parent=5 // pred_fallthru
      _
  $region6: #{point_transform.1} parent=0 // loop_footer
    %s12 = sadd.s32 1, %s8
  $region7: #{point_transform.1} parent=0 // loop_footer_branch
    %7 = sbr.rel target = $region3
  $region8: #{point_transform.1} parent=0 // loop_exit
    _

</llo_original>
